<compile_context>
chip_gen: v7x
topology: tpu7x:2x2x1
jax: 0.10.0
libtpu: 0.0.40
codegen_flags: <defaults>
</compile_context>

<pallas_src>
import functools

import jax
import jax.numpy as jnp
from jax import lax
from jax.experimental import pallas as pl
from jax.experimental.pallas import tpu as pltpu

POOL = 7
PAD = POOL // 2          # 3
_SUB = 8                 # sublane quantum (f32)
_LANE = 128              # lane quantum


def _round_up(x: int, m: int) -> int:
    return ((x + m - 1) // m) * m


# ----------------------------------------------------------------------------
# Exact global lower median (torch.median semantics) via 4-round radix select
# on the monotone uint32 image of the f32 bit pattern.  ~4 cheap streaming
# passes instead of a full sort.
# ----------------------------------------------------------------------------
def _lower_median(flat: jax.Array) -> jax.Array:
    n = flat.shape[0]
    k = jnp.int32((n - 1) // 2)                       # 0-based rank (lower median)
    u = lax.bitcast_convert_type(flat.astype(jnp.float32), jnp.uint32)
    neg = (u & jnp.uint32(0x80000000)) != 0
    key = jnp.where(neg, ~u, u | jnp.uint32(0x80000000))   # order-preserving map

    sel = jnp.uint32(0)
    for r, shift in enumerate((24, 16, 8, 0)):
        byte = ((key >> shift) & jnp.uint32(0xFF)).astype(jnp.int32)
        if r == 0:
            in_bucket = jnp.ones(key.shape, dtype=bool)
        else:
            hi = shift + 8
            in_bucket = (key >> hi) == (sel >> hi)
        hist = jnp.bincount(jnp.where(in_bucket, byte, 256), length=257)[:256]
        csum = jnp.cumsum(hist)
        b = jnp.argmax(csum > k).astype(jnp.int32)    # first bin with csum > k
        below = jnp.where(b > 0, csum[jnp.maximum(b - 1, 0)], 0).astype(jnp.int32)
        k = k - below
        sel = sel | (b.astype(jnp.uint32) << shift)

    u_med = jnp.where((sel & jnp.uint32(0x80000000)) != 0,
                      sel ^ jnp.uint32(0x80000000),   # originally non-negative
                      ~sel)                           # originally negative
    return lax.bitcast_convert_type(u_med, jnp.float32)


# ----------------------------------------------------------------------------
# Kernel: one (blk maps) x (th rows) x (full lane-padded width) tile per step.
# ----------------------------------------------------------------------------
def _nms_kernel(med_ref, top_ref, mid_ref, bot_ref, o_ref, *,
                h_real, w_real, th, wp_in, wp_out):
    blk = mid_ref.shape[0]
    neg_inf = jnp.float32(-jnp.inf)
    zero = jnp.float32(0.0)
    med = med_ref[0]

    # Rows [i*th - 8, i*th + th + 8) of the lane-padded map, assembled from
    # three 8-row-aligned pieces.  Single sublane-aligned concat; no scratch
    # store->reload round trip.
    stack = jnp.concatenate([top_ref[...], mid_ref[...], bot_ref[...]], axis=1)
    rows_s = th + 2 * _SUB

    # Validity mask: stack row s is global row g = i*th - 8 + s; real data sits
    # at lanes [PAD, PAD + w_real).  Everything invalid is the pool's -inf pad.
    g0 = pl.program_id(1) * th - _SUB
    grow = g0 + lax.broadcasted_iota(jnp.int32, (blk, rows_s, wp_in), 1)
    gcol = lax.broadcasted_iota(jnp.int32, (blk, rows_s, wp_in), 2)
    valid = (grow >= 0) & (grow < h_real) & (gcol >= PAD) & (gcol < PAD + w_real)

    # Threshold strictly below the global median to 0 (as in torch), keep the
    # out-of-image region at -inf so MaxPool2d's implicit padding is matched.
    x_thr = jnp.where(stack < med, zero, stack)
    x_thr = jnp.where(valid, x_thr, neg_inf)

    # Separable 7x7 max pool, log-depth tree per axis (3 shifts + 3 maxes).
    # ---- lane (W) pass ----
    a = jnp.maximum(x_thr[:, :, :wp_in - 1], x_thr[:, :, 1:])
    a = jnp.maximum(a[:, :, :wp_in - 3], a[:, :, 2:])
    rowmax = jnp.maximum(a[:, :, :wp_out], a[:, :, PAD:PAD + wp_out])

    # ---- sublane (H) pass ----
    b = jnp.maximum(rowmax[:, :rows_s - 1, :], rowmax[:, 1:, :])
    b = jnp.maximum(b[:, :rows_s - 3, :], b[:, 2:, :])
    mx = jnp.maximum(b[:, _SUB - PAD:_SUB - PAD + th, :], b[:, _SUB:_SUB + th, :])

    # Keep the response only where it equals its 7x7 neighbourhood max
    # (exact f32 equality, as in the PyTorch module).
    x_cmp = x_thr[:, _SUB:_SUB + th, PAD:PAD + wp_out]
    o_ref[...] = jnp.where(mx == x_cmp, x_cmp, zero)


# ----------------------------------------------------------------------------
# Tiling selection: whole-map tiles (optionally batched over maps) when they
# fit the per-generation budget, otherwise H tiles with a 3-row halo.
# ----------------------------------------------------------------------------
def _choose_tiling(n_maps, h, wp_in, budget_bytes, keep_two_steps):
    # ~12 live f32 copies of the (th + 16, wp_in) working set per map-tile
    per_row = 4 * 12 * wp_in

    def cost(th):
        return per_row * (th + 2 * _SUB)

    hp_whole = _round_up(max(h, 1), _SUB)
    if cost(hp_whole) <= budget_bytes:
        th = hp_whole
        hp = hp_whole
        cap = max(1, budget_bytes // cost(th))
        if keep_two_steps and n_maps >= 2:
            cap = min(cap, max(1, n_maps // 2))       # >= 2 grid steps (2 TCs)
        blk = 1
        for d in range(1, n_maps + 1):
            if n_maps % d == 0 and d <= cap:
                blk = d
    else:
        blk = 1
        th = (budget_bytes // per_row) - 2 * _SUB
        th = max(_SUB, (th // _SUB) * _SUB)
        th = min(th, max(_SUB, hp_whole - _SUB))
        hp = _round_up(h, th)
    return blk, th, hp


def nms_layer(x: jax.Array, *, max_rows_per_tile=None) -> jax.Array:
    """x: (num_image, 1, H, W) float32 -> (num_image, 1, H, W) float32."""
    n_img, c, h, w = x.shape
    x = x.astype(jnp.float32)
    n_maps = n_img * c

    # Exact global LOWER median (torch.median semantics).
    flat = x.reshape(-1)
    med = _lower_median(flat).reshape((1,))

    # Lane-dense layout: output width a multiple of 128; input width carries
    # an extra 3-lane -inf pool pad on the left and >= 3 on the right.
    wp_out = _round_up(w, _LANE)
    wp_in = _round_up(w + 2 * PAD, _LANE)
    if wp_in < wp_out + 2 * PAD:
        wp_in += _LANE

    # Per-generation VMEM sizing (v5e/v6e: 128 MiB physical, v7x: 64 MiB).
    try:
        vmem_cap = int(pltpu.get_tpu_info().vmem_capacity_bytes)
    except Exception:
        vmem_cap = 64 * 1024 * 1024
    vmem_limit = max(24 << 20, min(vmem_cap - (24 << 20), 100 << 20))
    budget = vmem_limit // 2
    keep_two_steps = vmem_cap <= (96 << 20)   # v7x-class parts have 2 TensorCores

    blk, th, hp = _choose_tiling(n_maps, h, wp_in, budget, keep_two_steps)
    if max_rows_per_tile is not None:         # manual override / test hook
        th = max(_SUB, _round_up(min(th, max_rows_per_tile), _SUB))
        hp = _round_up(h, th)

    # Pad to (n_maps, hp, wp_in); real data at rows [0, h), lanes [PAD, PAD+w).
    xm = x.reshape(n_maps, h, w)
    xpad = jnp.full((n_maps, hp, wp_in), -jnp.inf, dtype=jnp.float32)
    xpad = xpad.at[:, :h, PAD:PAD + w].set(xm)

    r = th // _SUB        # mid-tile height in 8-row slabs
    nh8 = hp // _SUB      # total 8-row slabs per map
    nh = hp // th         # H tiles per map
    grid = (n_maps // blk, nh)

    kernel = functools.partial(_nms_kernel, h_real=h, w_real=w, th=th,
                               wp_in=wp_in, wp_out=wp_out)

    out_pad = pl.pallas_call(
        kernel,
        out_shape=jax.ShapeDtypeStruct((n_maps, hp, wp_out), jnp.float32),
        grid_spec=pltpu.PrefetchScalarGridSpec(
            num_scalar_prefetch=1,            # median scalar -> SMEM
            grid=grid,
            in_specs=[
                # 8-row slab just above the tile (clamped; masked when absent)
                pl.BlockSpec((blk, _SUB, wp_in),
                             lambda m, i, _med: (m, jnp.maximum(i * r - 1, 0), 0)),
                # the tile itself
                pl.BlockSpec((blk, th, wp_in),
                             lambda m, i, _med: (m, i, 0)),
                # 8-row slab just below the tile (clamped; masked when absent)
                pl.BlockSpec((blk, _SUB, wp_in),
                             lambda m, i, _med: (m, jnp.minimum((i + 1) * r, nh8 - 1), 0)),
            ],
            out_specs=pl.BlockSpec((blk, th, wp_out),
                                   lambda m, i, _med: (m, i, 0)),
        ),
        compiler_params=pltpu.CompilerParams(
            dimension_semantics=("parallel", "parallel"),
            vmem_limit_bytes=int(vmem_limit),
        ),
    )(med, xpad, xpad, xpad)

    return out_pad[:, :h, :w].reshape(n_img, c, h, w)


# ----------------------------------------------------------------------------
# Pure-JAX reference mirroring the PyTorch forward (sort-based median).
# ----------------------------------------------------------------------------
def _nms_reference(x: jax.Array) -> jax.Array:
    x = x.astype(jnp.float32)
    flat = x.reshape(-1)
    med = jnp.sort(flat)[(flat.shape[0] - 1) // 2]
    x_thr = jnp.where(x < med, 0.0, x)
    mx = lax.reduce_window(
        x_thr, -jnp.inf, lax.max,
        window_dimensions=(1, 1, POOL, POOL),
        window_strides=(1, 1, 1, 1),
        padding=((0, 0), (0, 0), (PAD, PAD), (PAD, PAD)))
    return jnp.where(mx == x_thr, x_thr, 0.0)


if __name__ == "__main__":
    # NMSLayer operates on single-channel cornerness maps: (num_image, 1, H, W)
    x = jax.random.normal(jax.random.PRNGKey(0), (2, 1, 16, 16), dtype=jnp.float32)
    out = jax.block_until_ready(nms_layer(x))
    ref = jax.block_until_ready(_nms_reference(x))
    assert out.shape == (2, 1, 16, 16)
    assert jnp.allclose(out, ref), "mismatch vs reference"

    # Exercise the H-tiled (3-row halo) path on an odd-sized single image.
    x2 = jax.random.normal(jax.random.PRNGKey(1), (1, 1, 20, 17), dtype=jnp.float32)
    out2 = jax.block_until_ready(nms_layer(x2, max_rows_per_tile=8))
    ref2 = jax.block_until_ready(_nms_reference(x2))
    assert jnp.allclose(out2, ref2), "mismatch vs reference (tiled path)"

    print("KERNEL_OK")
</pallas_src>

<mosaic_0001>
module attributes {stable_mosaic.version = 11 : i64} {
  func.func @_nms_kernel(%arg0: i32, %arg1: i32, %arg2: memref<1xf32, #tpu.memory_space<smem>>, %arg3: memref<1x8x256xf32, #tpu.memory_space<vmem>>, %arg4: memref<1x16x256xf32, #tpu.memory_space<vmem>>, %arg5: memref<1x8x256xf32, #tpu.memory_space<vmem>>, %arg6: memref<1x16x128xf32, #tpu.memory_space<vmem>>) attributes {dimension_semantics = [#tpu.dimension_semantics<parallel>, #tpu.dimension_semantics<parallel>], iteration_bounds = array<i64: 2, 1>, scalar_prefetch = 1 : i64, scratch_operands = 0 : i64, tpu.core_type = #tpu.core_type<tc>, window_params = [{transform_indices = @transform_0, window_bounds = array<i64: 1, 8, 256>}, {transform_indices = @transform_1, window_bounds = array<i64: 1, 16, 256>}, {transform_indices = @transform_2, window_bounds = array<i64: 1, 8, 256>}, {transform_indices = @transform_3, window_bounds = array<i64: 1, 16, 128>}]} {
    %c0 = arith.constant 0 : index
    %0 = memref.load %arg2[%c0] : memref<1xf32, #tpu.memory_space<smem>>
    %c0_0 = arith.constant 0 : index
    %c0_1 = arith.constant 0 : index
    %c0_2 = arith.constant 0 : index
    %1 = vector.load %arg3[%c0_0, %c0_1, %c0_2] : memref<1x8x256xf32, #tpu.memory_space<vmem>>, vector<1x8x256xf32>
    %c0_3 = arith.constant 0 : index
    %c0_4 = arith.constant 0 : index
    %c0_5 = arith.constant 0 : index
    %2 = vector.load %arg4[%c0_3, %c0_4, %c0_5] : memref<1x16x256xf32, #tpu.memory_space<vmem>>, vector<1x16x256xf32>
    %c0_6 = arith.constant 0 : index
    %c0_7 = arith.constant 0 : index
    %c0_8 = arith.constant 0 : index
    %3 = vector.load %arg5[%c0_6, %c0_7, %c0_8] : memref<1x8x256xf32, #tpu.memory_space<vmem>>, vector<1x8x256xf32>
    %4 = tpu.concatenate %1, %2, %3 in 1 : vector<1x8x256xf32>, vector<1x16x256xf32>, vector<1x8x256xf32> -> vector<1x32x256xf32>
    %c16_i32 = arith.constant 16 : i32
    %5 = arith.muli %arg1, %c16_i32 : i32
    %c8_i32 = arith.constant 8 : i32
    %6 = arith.subi %5, %c8_i32 : i32
    %7 = tpu.iota {dimensions = array<i32: 1>} : vector<1x32x256xi32>
    %8 = vector.broadcast %6 : i32 to vector<1x32x256xi32>
    %9 = arith.addi %8, %7 : vector<1x32x256xi32>
    %10 = tpu.iota {dimensions = array<i32: 2>} : vector<1x32x256xi32>
    %c0_i32 = arith.constant 0 : i32
    %11 = vector.broadcast %c0_i32 : i32 to vector<1x32x256xi32>
    %12 = arith.cmpi sge, %9, %11 : vector<1x32x256xi32>
    %c16_i32_9 = arith.constant 16 : i32
    %13 = vector.broadcast %c16_i32_9 : i32 to vector<1x32x256xi32>
    %14 = arith.cmpi slt, %9, %13 : vector<1x32x256xi32>
    %15 = arith.andi %12, %14 : vector<1x32x256xi1>
    %c3_i32 = arith.constant 3 : i32
    %16 = vector.broadcast %c3_i32 : i32 to vector<1x32x256xi32>
    %17 = arith.cmpi sge, %10, %16 : vector<1x32x256xi32>
    %18 = arith.andi %15, %17 : vector<1x32x256xi1>
    %c19_i32 = arith.constant 19 : i32
    %19 = vector.broadcast %c19_i32 : i32 to vector<1x32x256xi32>
    %20 = arith.cmpi slt, %10, %19 : vector<1x32x256xi32>
    %21 = arith.andi %18, %20 : vector<1x32x256xi1>
    %22 = vector.broadcast %0 : f32 to vector<1x32x256xf32>
    %23 = arith.cmpf olt, %4, %22 : vector<1x32x256xf32>
    %cst = arith.constant 0.000000e+00 : f32
    %24 = vector.broadcast %cst : f32 to vector<1x32x256xf32>
    %25 = arith.select %23, %24, %4 : vector<1x32x256xi1>, vector<1x32x256xf32>
    %cst_10 = arith.constant 0xFF800000 : f32
    %26 = vector.broadcast %cst_10 : f32 to vector<1x32x256xf32>
    %27 = arith.select %21, %25, %26 : vector<1x32x256xi1>, vector<1x32x256xf32>
    %28 = vector.extract_strided_slice %27 {offsets = [0, 0, 0], sizes = [1, 32, 255], strides = [1, 1, 1]} : vector<1x32x256xf32> to vector<1x32x255xf32>
    %29 = vector.extract_strided_slice %27 {offsets = [0, 0, 1], sizes = [1, 32, 255], strides = [1, 1, 1]} : vector<1x32x256xf32> to vector<1x32x255xf32>
    %30 = arith.maximumf %28, %29 : vector<1x32x255xf32>
    %31 = vector.extract_strided_slice %30 {offsets = [0, 0, 0], sizes = [1, 32, 253], strides = [1, 1, 1]} : vector<1x32x255xf32> to vector<1x32x253xf32>
    %32 = vector.extract_strided_slice %30 {offsets = [0, 0, 2], sizes = [1, 32, 253], strides = [1, 1, 1]} : vector<1x32x255xf32> to vector<1x32x253xf32>
    %33 = arith.maximumf %31, %32 : vector<1x32x253xf32>
    %34 = vector.extract_strided_slice %33 {offsets = [0, 0, 0], sizes = [1, 32, 128], strides = [1, 1, 1]} : vector<1x32x253xf32> to vector<1x32x128xf32>
    %35 = vector.extract_strided_slice %33 {offsets = [0, 0, 3], sizes = [1, 32, 128], strides = [1, 1, 1]} : vector<1x32x253xf32> to vector<1x32x128xf32>
    %36 = arith.maximumf %34, %35 : vector<1x32x128xf32>
    %37 = vector.extract_strided_slice %36 {offsets = [0, 0, 0], sizes = [1, 31, 128], strides = [1, 1, 1]} : vector<1x32x128xf32> to vector<1x31x128xf32>
    %38 = vector.extract_strided_slice %36 {offsets = [0, 1, 0], sizes = [1, 31, 128], strides = [1, 1, 1]} : vector<1x32x128xf32> to vector<1x31x128xf32>
    %39 = arith.maximumf %37, %38 : vector<1x31x128xf32>
    %40 = vector.extract_strided_slice %39 {offsets = [0, 0, 0], sizes = [1, 29, 128], strides = [1, 1, 1]} : vector<1x31x128xf32> to vector<1x29x128xf32>
    %41 = vector.extract_strided_slice %39 {offsets = [0, 2, 0], sizes = [1, 29, 128], strides = [1, 1, 1]} : vector<1x31x128xf32> to vector<1x29x128xf32>
    %42 = arith.maximumf %40, %41 : vector<1x29x128xf32>
    %43 = vector.extract_strided_slice %42 {offsets = [0, 5, 0], sizes = [1, 16, 128], strides = [1, 1, 1]} : vector<1x29x128xf32> to vector<1x16x128xf32>
    %44 = vector.extract_strided_slice %42 {offsets = [0, 8, 0], sizes = [1, 16, 128], strides = [1, 1, 1]} : vector<1x29x128xf32> to vector<1x16x128xf32>
    %45 = arith.maximumf %43, %44 : vector<1x16x128xf32>
    %46 = vector.extract_strided_slice %27 {offsets = [0, 8, 3], sizes = [1, 16, 128], strides = [1, 1, 1]} : vector<1x32x256xf32> to vector<1x16x128xf32>
    %47 = arith.cmpf oeq, %45, %46 : vector<1x16x128xf32>
    %cst_11 = arith.constant 0.000000e+00 : f32
    %48 = vector.broadcast %cst_11 : f32 to vector<1x16x128xf32>
    %49 = arith.select %47, %46, %48 : vector<1x16x128xi1>, vector<1x16x128xf32>
    %c0_12 = arith.constant 0 : index
    %c0_13 = arith.constant 0 : index
    %c0_14 = arith.constant 0 : index
    %50 = vector.load %arg6[%c0_12, %c0_13, %c0_14] : memref<1x16x128xf32, #tpu.memory_space<vmem>>, vector<1x16x128xf32>
    tpu.vector_store %arg6[%c0_12, %c0_13, %c0_14], %49 {strides = array<i32>} : memref<1x16x128xf32, #tpu.memory_space<vmem>>, vector<1x16x128xf32>,
    return
  }
  func.func @transform_0(%arg0: i32, %arg1: i32, %arg2: memref<1xf32, #tpu.memory_space<smem>>) -> (i32, i32, i32) {
    %c2_i32 = arith.constant 2 : i32
    %0 = arith.muli %arg1, %c2_i32 : i32
    %c1_i32 = arith.constant 1 : i32
    %1 = arith.subi %0, %c1_i32 : i32
    %c0_i32 = arith.constant 0 : i32
    %2 = arith.maxsi %1, %c0_i32 : i32
    %c0_i32_0 = arith.constant 0 : i32
    %c0_i32_1 = arith.constant 0 : i32
    return %arg0, %2, %c0_i32_0 : i32, i32, i32
  }
  func.func @transform_1(%arg0: i32, %arg1: i32, %arg2: memref<1xf32, #tpu.memory_space<smem>>) -> (i32, i32, i32) {
    %c0_i32 = arith.constant 0 : i32
    %c0_i32_0 = arith.constant 0 : i32
    return %arg0, %arg1, %c0_i32 : i32, i32, i32
  }
  func.func @transform_2(%arg0: i32, %arg1: i32, %arg2: memref<1xf32, #tpu.memory_space<smem>>) -> (i32, i32, i32) {
    %c1_i32 = arith.constant 1 : i32
    %0 = arith.addi %arg1, %c1_i32 : i32
    %c2_i32 = arith.constant 2 : i32
    %1 = arith.muli %0, %c2_i32 : i32
    %c1_i32_0 = arith.constant 1 : i32
    %2 = arith.minsi %1, %c1_i32_0 : i32
    %c0_i32 = arith.constant 0 : i32
    %c0_i32_1 = arith.constant 0 : i32
    return %arg0, %2, %c0_i32 : i32, i32, i32
  }
  func.func @transform_3(%arg0: i32, %arg1: i32, %arg2: memref<1xf32, #tpu.memory_space<smem>>) -> (i32, i32, i32) {
    %c0_i32 = arith.constant 0 : i32
    %c0_i32_0 = arith.constant 0 : i32
    return %arg0, %arg1, %c0_i32 : i32, i32, i32
  }
}

</mosaic_0001>

<llo_original>
// kernel: tpu_custom_call.1
$region0: #{tpu_custom_call.1}
  #allocation0 [shape = 'u32[]', space=smem, size = 0x4, offset = 0x4, fixed_abs, tag = 'smem constant byte address 0x4 - core index']
  #allocation1 [shape = 'u32[144,128]{1,0:T(1,128)}', space=vmem, size = 0x12000, scoped, tag = 'internal scratch']
  #allocation2 [shape = 's32[1]{0}', space=sflag, size = 0x4, scoped, tag = 'scoped memory for tpu_custom_call.1']
  #allocation3 [shape = 'f32[1]{0:T(128)S(6)}', space=smem, size = 0x200, scoped, tag = 'prefetched SMEM operand 0']
  %s0 = inlined_call_operand.<no memory space> [shape: f32[1], index: 0, kind: input, shape index: {}]
  %s1 = inlined_call_operand.hbm [shape: f32[2,16,256], index: 1, kind: input, shape index: {}]
  %s2 = inlined_call_operand.hbm [shape: f32[2,16,256], index: 2, kind: input, shape index: {}]
  %s3 = inlined_call_operand.hbm [shape: f32[2,16,256], index: 3, kind: input, shape index: {}]
  %s4 = inlined_call_operand.hbm [shape: f32[2,16,128], index: 4, kind: output, shape index: {}]
  %s5 = sld [smem:[#allocation0]]
  $region57: #{tpu_custom_call.1} parent=0
    _
  %s7 = ssub.s32 1, %s5
  %s8 = scalar_select 0, %s7, %s5
  %9 = sst [smem:[#allocation3]] %s0
  $region1: #{tpu_custom_call.1} parent=0
    #allocation4 [shape = 'u8[16384]{0}', space=vmem, size = 0x4000, scoped, tag = 'input window, operand 1']
    #allocation5 [shape = 's32[2]{0}', space=sflag, size = 0x8, scoped, tag = 'scoped memory for tpu_custom_call.1']
    #allocation6 [shape = 's32[2]{0}', space=sflag, size = 0x8, scoped, tag = 'scoped memory for tpu_custom_call.1']
    #allocation7 [shape = 'u8[32768]{0}', space=vmem, size = 0x8000, scoped, tag = 'input window, operand 2']
    #allocation8 [shape = 's32[2]{0}', space=sflag, size = 0x8, scoped, tag = 'scoped memory for tpu_custom_call.1']
    #allocation9 [shape = 'u8[16384]{0}', space=vmem, size = 0x4000, scoped, tag = 'input window, operand 3']
    #allocation10 [shape = 'u8[16384]{0}', space=vmem, size = 0x4000, scoped, tag = 'output window, operand 0']
    %10 = vsyncpa [#allocation5], 0
    %s11 = scalar_lea.sflag [#allocation5], 1
    %12 = vsyncpa %s11, 0
    %13 = vsyncpa [#allocation8], 0
    %s14 = scalar_lea.sflag [#allocation8], 1
    %15 = vsyncpa %s14, 0
    %16 = vsyncpa [#allocation6], 0
    %s17 = scalar_lea.sflag [#allocation6], 1
    %18 = vsyncpa %s17, 0
    loop: start=0, step=1, limit=4
    $region2: #{tpu_custom_call.1} parent=1 // loop_pre_header
      _
    $region3: #{tpu_custom_call.1} parent=1 // loop_header
      %s20 = sphi 0, %s24
      %p21 = scmp.ge.s32.totalorder %s20, 4
      %s27 = sphi 0, %s39
      %s28 = sphi 0, %s35
      %s29 = sphi 0, %s27
      %s30 = sphi 0, %s28
      %s31 = sphi 0, %s29
      %s32 = sphi 0, %s30
      %s52 = sphi 0, %s54
      %s55 = sphi 0, %s52
      %s56 = sphi 0, %s55
      %s72 = sphi 0, %s56
      %s80 = sphi 0, %s82
      %s83 = sphi 0, %s80
      %s84 = sphi 0, %s83
      %s100 = sphi 0, %s84
      %s116 = sphi 0, %s118
      %s119 = sphi 0, %s116
      %s120 = sphi 0, %s119
      %s136 = sphi 0, %s120
      %s144 = sphi 0, %s146
      %s147 = sphi 0, %s144
      %s148 = sphi 0, %s147
      %s164 = sphi 0, %s148
    $region4: #{tpu_custom_call.1} parent=1 // loop_header_branch
      %23 = sbr.rel (%p21) target = $region8
    $region5: #{tpu_custom_call.1} parent=1 // loop_body
      %s25 = ssub.s32 %s20, 1
      %s26 = ssub.s32 %s20, 2
      %s33 = sadd.s32 1, %s28
      %p34 = scmp.ge.s32.totalorder %s33, 1
      %s35 = scalar_select %p34, 0, %s33
      %s36 = sadd.s32 1, %s27
      %s37 = scalar_select %p34, %s36, %s27
      %p38 = scmp.ge.s32.totalorder %s37, 2
      %s39 = scalar_select %p38, 0, %s37
      %s40 = smul.u32 %s28, 2
      %s41 = ssub.s32 %s40, 1
      %p42 = scmp.gt.s32.totalorder %s41, 0
      %s43 = scalar_select %p42, %s41, 0
      %s44 = smul.u32 %s35, 2
      %s45 = ssub.s32 %s44, 1
      %p46 = scmp.gt.s32.totalorder %s45, 0
      %s47 = scalar_select %p46, %s45, 0
      %s48 = ssub.s32 %s27, %s39
      %s49 = ssub.s32 %s43, %s47
      %s50 = sor.u32 %s48, %s49
      %p51 = scmp.eq.s32.totalorder %s50, 0
      %s53 = sadd.s32 %s52, 1
      %s54 = scalar_select %p51, %s52, %s53
      %p57 = pneg %p51
      %p58 = scmp.eq.s32.totalorder %s20, 1
      %p59 = por %p57, %p58
      %p60 = scmp.ne.s32.totalorder %s52, %s55
      %p61 = scmp.eq.s32.totalorder %s20, 0
      %p62 = por %p60, %p61
      %p63 = scmp.ne.s32.totalorder %s52, %s55
      %p64 = scmp.eq.s32.totalorder %s25, 1
      %p65 = por %p63, %p64
      %p66 = scmp.ne.s32.totalorder %s55, %s56
      %p67 = scmp.eq.s32.totalorder %s25, 0
      %p68 = por %p66, %p67
      %p69 = scmp.ne.s32.totalorder %s55, %s56
      %p70 = scmp.eq.s32.totalorder %s26, 1
      %p71 = por %p69, %p70
      %p73 = scmp.ne.s32.totalorder %s56, %s72
      %p74 = scmp.eq.s32.totalorder %s26, 0
      %p75 = por %p73, %p74
      %s76 = ssub.s32 %s27, %s39
      %s77 = ssub.s32 %s28, %s35
      %s78 = sor.u32 %s76, %s77
      %p79 = scmp.eq.s32.totalorder %s78, 0
      %s81 = sadd.s32 %s80, 1
      %s82 = scalar_select %p79, %s80, %s81
      %p85 = pneg %p79
      %p86 = scmp.eq.s32.totalorder %s20, 1
      %p87 = por %p85, %p86
      %p88 = scmp.ne.s32.totalorder %s80, %s83
      %p89 = scmp.eq.s32.totalorder %s20, 0
      %p90 = por %p88, %p89
      %p91 = scmp.ne.s32.totalorder %s80, %s83
      %p92 = scmp.eq.s32.totalorder %s25, 1
      %p93 = por %p91, %p92
      %p94 = scmp.ne.s32.totalorder %s83, %s84
      %p95 = scmp.eq.s32.totalorder %s25, 0
      %p96 = por %p94, %p95
      %p97 = scmp.ne.s32.totalorder %s83, %s84
      %p98 = scmp.eq.s32.totalorder %s26, 1
      %p99 = por %p97, %p98
      %p101 = scmp.ne.s32.totalorder %s84, %s100
      %p102 = scmp.eq.s32.totalorder %s26, 0
      %p103 = por %p101, %p102
      %s104 = sadd.s32 %s28, 1
      %s105 = smul.u32 %s104, 2
      %p106 = scmp.lt.s32.totalorder %s105, 1
      %s107 = scalar_select %p106, %s105, 1
      %s108 = sadd.s32 %s35, 1
      %s109 = smul.u32 %s108, 2
      %p110 = scmp.lt.s32.totalorder %s109, 1
      %s111 = scalar_select %p110, %s109, 1
      %s112 = ssub.s32 %s27, %s39
      %s113 = ssub.s32 %s107, %s111
      %s114 = sor.u32 %s112, %s113
      %p115 = scmp.eq.s32.totalorder %s114, 0
      %s117 = sadd.s32 %s116, 1
      %s118 = scalar_select %p115, %s116, %s117
      %p121 = pneg %p115
      %p122 = scmp.eq.s32.totalorder %s20, 1
      %p123 = por %p121, %p122
      %p124 = scmp.ne.s32.totalorder %s116, %s119
      %p125 = scmp.eq.s32.totalorder %s20, 0
      %p126 = por %p124, %p125
      %p127 = scmp.ne.s32.totalorder %s116, %s119
      %p128 = scmp.eq.s32.totalorder %s25, 1
      %p129 = por %p127, %p128
      %p130 = scmp.ne.s32.totalorder %s119, %s120
      %p131 = scmp.eq.s32.totalorder %s25, 0
      %p132 = por %p130, %p131
      %p133 = scmp.ne.s32.totalorder %s119, %s120
      %p134 = scmp.eq.s32.totalorder %s26, 1
      %p135 = por %p133, %p134
      %p137 = scmp.ne.s32.totalorder %s120, %s136
      %p138 = scmp.eq.s32.totalorder %s26, 0
      %p139 = por %p137, %p138
      %s140 = ssub.s32 %s27, %s39
      %s141 = ssub.s32 %s28, %s35
      %s142 = sor.u32 %s140, %s141
      %p143 = scmp.eq.s32.totalorder %s142, 0
      %s145 = sadd.s32 %s144, 1
      %s146 = scalar_select %p143, %s144, %s145
      %p149 = pneg %p143
      %p150 = scmp.eq.s32.totalorder %s20, 1
      %p151 = por %p149, %p150
      %p152 = scmp.ne.s32.totalorder %s144, %s147
      %p153 = scmp.eq.s32.totalorder %s20, 0
      %p154 = por %p152, %p153
      %p155 = scmp.ne.s32.totalorder %s144, %s147
      %p156 = scmp.eq.s32.totalorder %s25, 1
      %p157 = por %p155, %p156
      %p158 = scmp.ne.s32.totalorder %s147, %s148
      %p159 = scmp.eq.s32.totalorder %s25, 0
      %p160 = por %p158, %p159
      %p161 = scmp.ne.s32.totalorder %s147, %s148
      %p162 = scmp.eq.s32.totalorder %s26, 1
      %p163 = por %p161, %p162
      %p165 = scmp.ne.s32.totalorder %s148, %s164
      %p166 = scmp.eq.s32.totalorder %s26, 0
      %p167 = por %p165, %p166
      %p168 = scmp.le.s32.totalorder 1, %s20
      %p169 = scmp.lt.s32.totalorder %s20, 3
      %p170 = pnand %p168, %p169
      %p171 = pneg %p170
      // Predicated region
      $region9: #{tpu_custom_call.1} parent=5 // pred_check
        _
      $region10: #{tpu_custom_call.1} parent=5 // pred_check_branch
        %173 = sbr.rel (%p170) target = $region12
      $region11: #{tpu_custom_call.1} parent=5 // pred_region
        %s174 = ssub.s32 %s20, 1
      $region12: #{tpu_custom_call.1} parent=5 // pred_fallthru
        _
      %p175 = scmp.lt.s32.totalorder %s20, 2
      // Predicated region
      $region13: #{tpu_custom_call.1} parent=5 // pred_check
        %p176 = pneg %p175
      $region14: #{tpu_custom_call.1} parent=5 // pred_check_branch
        %178 = sbr.rel (%p176) target = $region16
      $region15: #{tpu_custom_call.1} parent=5 // pred_region
        // Predicated region
        $region17: #{tpu_custom_call.1} parent=15 // pred_check
          %p179 = pneg %p62
        $region18: #{tpu_custom_call.1} parent=15 // pred_check_branch
          %181 = sbr.rel (%p179) target = $region20
        $region19: #{tpu_custom_call.1} parent=15 // pred_region
          %s182 = sand.u32 %s52, 1
          %s183 = scalar_lea.sflag [#allocation5], %s182
          %s184 = sand.u32 %s52, 1
          %s185 = smul.addr %s184, 16
          %s186 = scalar_lea.vmem [#allocation4], %s185
          %s187 = smul.u32 %s28, 2
          %s188 = ssub.s32 %s187, 1
          %p189 = scmp.gt.s32.totalorder %s188, 0
          %s190 = scalar_select %p189, %s188, 0
          %s192 = ssub.s32 256, 256
          %193 = vsyncadd %s183, %s192
          %s194 = smul.addr %s190, 2
          %s195 = smul.addr %s27, 4
          %s196 = sadd.s32 %s194, %s195
          %s197 = smul.addr %s196, 128
          %s198 = scalar_lea.hbm %s1, %s197
          %s200 = sshll.u32 %s186, 4
          %s201 = int_to_ptr.vmem [resolvable:$true] %s200
          %203 = dma.hbm_to_vmem [thread:$0]  %s198, 256, %s201, %s183
        $region20: #{tpu_custom_call.1} parent=15 // pred_fallthru
          _
        // Predicated region
        $region21: #{tpu_custom_call.1} parent=15 // pred_check
          %p204 = pneg %p90
        $region22: #{tpu_custom_call.1} parent=15 // pred_check_branch
          %206 = sbr.rel (%p204) target = $region24
        $region23: #{tpu_custom_call.1} parent=15 // pred_region
          %s207 = sand.u32 %s20, 1
          %s208 = scalar_lea.sflag [#allocation8], %s207
          %s209 = sand.u32 %s80, 1
          %s210 = smul.addr %s209, 32
          %s211 = scalar_lea.vmem [#allocation7], %s210
          %s212 = smul.u32 2, %s28
          %s214 = ssub.s32 512, 512
          %215 = vsyncadd %s208, %s214
          %s216 = smul.addr %s212, 2
          %s217 = smul.addr %s27, 4
          %s218 = sadd.s32 %s216, %s217
          %s219 = smul.addr %s218, 128
          %s220 = scalar_lea.hbm %s2, %s219
          %s221 = sshll.u32 %s211, 4
          %s222 = int_to_ptr.vmem [resolvable:$true] %s221
          %227 = dma.hbm_to_vmem [thread:$0]  %s220, 512, %s222, %s208, 256, 256, 16
        $region24: #{tpu_custom_call.1} parent=15 // pred_fallthru
          _
        // Predicated region
        $region25: #{tpu_custom_call.1} parent=15 // pred_check
          %p228 = pneg %p126
        $region26: #{tpu_custom_call.1} parent=15 // pred_check_branch
          %230 = sbr.rel (%p228) target = $region28
        $region27: #{tpu_custom_call.1} parent=15 // pred_region
          %s231 = sand.u32 %s20, 1
          %s232 = scalar_lea.sflag [#allocation8], %s231
          %s233 = sand.u32 %s116, 1
          %s234 = smul.addr %s233, 16
          %s235 = scalar_lea.vmem [#allocation9], %s234
          %s236 = sadd.s32 %s28, 1
          %s237 = smul.u32 %s236, 2
          %p238 = scmp.lt.s32.totalorder %s237, 1
          %s239 = scalar_select %p238, %s237, 1
          %s241 = ssub.s32 256, 256
          %242 = vsyncadd %s232, %s241
          %s243 = smul.addr %s239, 2
          %s244 = smul.addr %s27, 4
          %s245 = sadd.s32 %s243, %s244
          %s246 = smul.addr %s245, 128
          %s247 = scalar_lea.hbm %s3, %s246
          %s249 = sshll.u32 %s235, 4
          %s250 = int_to_ptr.vmem [resolvable:$true] %s249
          %252 = dma.hbm_to_vmem [thread:$0]  %s247, 256, %s250, %s232
        $region28: #{tpu_custom_call.1} parent=15 // pred_fallthru
          _
      $region16: #{tpu_custom_call.1} parent=5 // pred_fallthru
        _
      %p253 = scmp.le.s32.totalorder 1, %s20
      %p254 = scmp.lt.s32.totalorder %s20, 3
      %p255 = pnand %p253, %p254
      %p256 = pneg %p255
      // Predicated region
      $region29: #{tpu_custom_call.1} parent=5 // pred_check
        _
      $region30: #{tpu_custom_call.1} parent=5 // pred_check_branch
        %258 = sbr.rel (%p255) target = $region32
      $region31: #{tpu_custom_call.1} parent=5 // pred_region
        %s259 = ssub.s32 %s20, 1
        %s260 = sand.u32 %s55, 1
        %s261 = scalar_lea.sflag [#allocation5], %s260
        %s262 = sand.u32 %s55, 1
        %s263 = smul.addr %s262, 16
        %s264 = scalar_lea.vmem [#allocation4], %s263
        // Predicated region
        $region33: #{tpu_custom_call.1} parent=31 // pred_check
          %p265 = pneg %p68
        $region34: #{tpu_custom_call.1} parent=31 // pred_check_branch
          %267 = sbr.rel (%p265) target = $region36
        $region35: #{tpu_custom_call.1} parent=31 // pred_region
          %268 = dma.done %s261, 256
        $region36: #{tpu_custom_call.1} parent=31 // pred_fallthru
          _
        %s269 = sand.u32 %s25, 1
        %s270 = scalar_lea.sflag [#allocation8], %s269
        %s271 = sand.u32 %s83, 1
        %s272 = smul.addr %s271, 32
        %s273 = scalar_lea.vmem [#allocation7], %s272
        // Predicated region
        $region37: #{tpu_custom_call.1} parent=31 // pred_check
          %p274 = pneg %p96
        $region38: #{tpu_custom_call.1} parent=31 // pred_check_branch
          %276 = sbr.rel (%p274) target = $region40
        $region39: #{tpu_custom_call.1} parent=31 // pred_region
          %277 = dma.done %s270, 512
        $region40: #{tpu_custom_call.1} parent=31 // pred_fallthru
          _
        %s278 = sand.u32 %s25, 1
        %s279 = scalar_lea.sflag [#allocation8], %s278
        %s280 = sand.u32 %s119, 1
        %s281 = smul.addr %s280, 16
        %s282 = scalar_lea.vmem [#allocation9], %s281
        // Predicated region
        $region41: #{tpu_custom_call.1} parent=31 // pred_check
          %p283 = pneg %p132
        $region42: #{tpu_custom_call.1} parent=31 // pred_check_branch
          %285 = sbr.rel (%p283) target = $region44
        $region43: #{tpu_custom_call.1} parent=31 // pred_region
          %286 = dma.done %s279, 256
        $region44: #{tpu_custom_call.1} parent=31 // pred_fallthru
          _
        %s287 = sand.u32 %s55, 1
        %s288 = scalar_lea.sflag [#allocation5], %s287
        %s289 = sand.u32 %s55, 1
        %s290 = smul.addr %s289, 16
        %s291 = scalar_lea.vmem [#allocation4], %s290
        %p292 = pneg %p68
        %p293 = pneg %p65
        %s294 = sand.u32 %s25, 1
        %s295 = scalar_lea.sflag [#allocation8], %s294
        %s296 = sand.u32 %s83, 1
        %s297 = smul.addr %s296, 32
        %s298 = scalar_lea.vmem [#allocation7], %s297
        %p299 = pneg %p96
        %p300 = pneg %p93
        %s301 = sand.u32 %s25, 1
        %s302 = scalar_lea.sflag [#allocation8], %s301
        %s303 = sand.u32 %s119, 1
        %s304 = smul.addr %s303, 16
        %s305 = scalar_lea.vmem [#allocation9], %s304
        %p306 = pneg %p132
        %p307 = pneg %p129
        %p308 = pneg %p160
        %p309 = pneg %p157
        %s310 = sand.u32 %s147, 1
        %s311 = scalar_lea.sflag [#allocation6], %s310
        %s312 = sand.u32 %s147, 1
        %s313 = smul.addr %s312, 16
        %s314 = scalar_lea.vmem [#allocation10], %s313
        %s315 = smul.u32 %s30, 2
        %s316 = ssub.s32 %s315, 1
        %p317 = scmp.gt.s32.totalorder %s316, 0
        %s318 = scalar_select %p317, %s316, 0
        %s319 = smul.u32 2, %s30
        %s320 = sadd.s32 %s30, 1
        %s321 = smul.u32 %s320, 2
        %p322 = scmp.lt.s32.totalorder %s321, 1
        %s323 = scalar_select %p322, %s321, 1
        %s324 = smul.u32 2, %s30
        %s325 = sld [smem:[#allocation3]]
        %v326 = vld [vmem:[%s264] sm:$0xff]
        %v327 = vld [vmem:[%s264 + $0x8] sm:$0xff]
        %v328 = vld [vmem:[%s273] sm:$0xff]
        %v329 = vld [vmem:[%s273 + $0x8] sm:$0xff]
        %v330 = vld [vmem:[%s273 + $0x10] sm:$0xff]
        %v331 = vld [vmem:[%s273 + $0x18] sm:$0xff]
        %v332 = vld [vmem:[%s282] sm:$0xff]
        %v333 = vld [vmem:[%s282 + $0x8] sm:$0xff]
        %s334 = smul.u32 %s30, 16
        %s335 = ssub.s32 %s334, 8
        %v336 = vlaneseq
        %v337 = vshrl.u32 %v336, 7
        %v338 = vadd.s32 %v337, 8
        %v339 = vadd.s32 %v337, 16
        %v340 = vadd.s32 %v337, 24
        %v341 = vstv %s335
        %v342 = vadd.s32 %v341, %v337
        %v343 = vadd.s32 %v341, %v338
        %v344 = vadd.s32 %v341, %v339
        %v345 = vadd.s32 %v341, %v340
        %v346 = vlaneseq
        %v347 = vand.u32 %v346, 127
        %v348 = vadd.s32 %v347, 128
        %vm349 = vcmp.ge.s32.totalorder %v342, 0
        %vm350 = vcmp.ge.s32.totalorder %v343, 0
        %vm351 = vcmp.ge.s32.totalorder %v344, 0
        %vm352 = vcmp.ge.s32.totalorder %v345, 0
        %vm353 = vcmp.lt.s32.totalorder %v342, 16
        %vm354 = vcmp.lt.s32.totalorder %v343, 16
        %vm355 = vcmp.lt.s32.totalorder %v344, 16
        %vm356 = vcmp.lt.s32.totalorder %v345, 16
        %vm357 = vmand %vm349, %vm353
        %vm358 = vmand %vm350, %vm354
        %vm359 = vmand %vm351, %vm355
        %vm360 = vmand %vm352, %vm356
        %vm361 = vcmp.ge.s32.totalorder %v347, 3
        %vm362 = vcmp.ge.s32.totalorder %v348, 3
        %vm363 = vmand %vm357, %vm361
        %vm364 = vmand %vm357, %vm362
        %vm365 = vmand %vm358, %vm361
        %vm366 = vmand %vm358, %vm362
        %vm367 = vmand %vm359, %vm361
        %vm368 = vmand %vm359, %vm362
        %vm369 = vmand %vm360, %vm361
        %vm370 = vmand %vm360, %vm362
        %vm371 = vcmp.lt.s32.totalorder %v347, 19
        %vm372 = vcmp.lt.s32.totalorder %v348, 19
        %vm373 = vmand %vm363, %vm371
        %vm374 = vmand %vm364, %vm372
        %vm375 = vmand %vm365, %vm371
        %vm376 = vmand %vm366, %vm372
        %vm377 = vmand %vm367, %vm371
        %vm378 = vmand %vm368, %vm372
        %vm379 = vmand %vm369, %vm371
        %vm380 = vmand %vm370, %vm372
        %v381 = vstv %s325
        %vm382 = vcmp.lt.f32.partialorder %v326, %v381
        %vm383 = vcmp.lt.f32.partialorder %v327, %v381
        %vm384 = vcmp.lt.f32.partialorder %v328, %v381
        %vm385 = vcmp.lt.f32.partialorder %v329, %v381
        %vm386 = vcmp.lt.f32.partialorder %v330, %v381
        %vm387 = vcmp.lt.f32.partialorder %v331, %v381
        %vm388 = vcmp.lt.f32.partialorder %v332, %v381
        %vm389 = vcmp.lt.f32.partialorder %v333, %v381
        %v390 = vsel %vm382, 0.0, %v326
        %v391 = vsel %vm383, 0.0, %v327
        %v392 = vsel %vm384, 0.0, %v328
        %v393 = vsel %vm385, 0.0, %v329
        %v394 = vsel %vm386, 0.0, %v330
        %v395 = vsel %vm387, 0.0, %v331
        %v396 = vsel %vm388, 0.0, %v332
        %v397 = vsel %vm389, 0.0, %v333
        %v398 = vsel %vm373, %v390, -inf
        %v399 = vsel %vm374, %v391, -inf
        %v400 = vsel %vm375, %v392, -inf
        %v401 = vsel %vm376, %v393, -inf
        %v402 = vsel %vm377, %v394, -inf
        %v403 = vsel %vm378, %v395, -inf
        %v404 = vsel %vm379, %v396, -inf
        %v405 = vsel %vm380, %v397, -inf
        %414 = vrot.lane.b32.xlu0 %v398, 127
        %v415 = vpop.permute.xlu0 %414
        %416 = vrot.lane.b32.xlu0 %v399, 127
        %v417 = vpop.permute.xlu0 %416
        %418 = vrot.lane.b32.xlu0 %v400, 127
        %v419 = vpop.permute.xlu0 %418
        %420 = vrot.lane.b32.xlu0 %v401, 127
        %v421 = vpop.permute.xlu0 %420
        %422 = vrot.lane.b32.xlu0 %v402, 127
        %v423 = vpop.permute.xlu0 %422
        %424 = vrot.lane.b32.xlu0 %v403, 127
        %v425 = vpop.permute.xlu0 %424
        %426 = vrot.lane.b32.xlu0 %v404, 127
        %v427 = vpop.permute.xlu0 %426
        %428 = vrot.lane.b32.xlu0 %v405, 127
        %v429 = vpop.permute.xlu0 %428
        %vm430 = vcmask 1039360
        %v431 = vsel %vm430, %v415, %v417
        %v432 = vsel %vm430, %v419, %v421
        %v433 = vsel %vm430, %v423, %v425
        %v434 = vsel %vm430, %v427, %v429
        %v443 = vmax.f32 %v398, %v431
        %v444 = vmax.f32 %v399, %v417
        %v445 = vmax.f32 %v400, %v432
        %v446 = vmax.f32 %v401, %v421
        %v447 = vmax.f32 %v402, %v433
        %v448 = vmax.f32 %v403, %v425
        %v449 = vmax.f32 %v404, %v434
        %v450 = vmax.f32 %v405, %v429
        %459 = vrot.lane.b32.xlu0 %v443, 126
        %v460 = vpop.permute.xlu0 %459
        %461 = vrot.lane.b32.xlu0 %v444, 126
        %v462 = vpop.permute.xlu0 %461
        %463 = vrot.lane.b32.xlu0 %v445, 126
        %v464 = vpop.permute.xlu0 %463
        %465 = vrot.lane.b32.xlu0 %v446, 126
        %v466 = vpop.permute.xlu0 %465
        %467 = vrot.lane.b32.xlu0 %v447, 126
        %v468 = vpop.permute.xlu0 %467
        %469 = vrot.lane.b32.xlu0 %v448, 126
        %v470 = vpop.permute.xlu0 %469
        %471 = vrot.lane.b32.xlu0 %v449, 126
        %v472 = vpop.permute.xlu0 %471
        %473 = vrot.lane.b32.xlu0 %v450, 126
        %v474 = vpop.permute.xlu0 %473
        %vm475 = vcmask 1031168
        %v476 = vsel %vm475, %v460, %v462
        %v477 = vsel %vm475, %v464, %v466
        %v478 = vsel %vm475, %v468, %v470
        %v479 = vsel %vm475, %v472, %v474
        %v488 = vmax.f32 %v443, %v476
        %v489 = vmax.f32 %v444, %v462
        %v490 = vmax.f32 %v445, %v477
        %v491 = vmax.f32 %v446, %v466
        %v492 = vmax.f32 %v447, %v478
        %v493 = vmax.f32 %v448, %v470
        %v494 = vmax.f32 %v449, %v479
        %v495 = vmax.f32 %v450, %v474
        %504 = vrot.lane.b32.xlu0 %v488, 125
        %v505 = vpop.permute.xlu0 %504
        %506 = vrot.lane.b32.xlu0 %v489, 125
        %v507 = vpop.permute.xlu0 %506
        %508 = vrot.lane.b32.xlu0 %v490, 125
        %v509 = vpop.permute.xlu0 %508
        %510 = vrot.lane.b32.xlu0 %v491, 125
        %v511 = vpop.permute.xlu0 %510
        %512 = vrot.lane.b32.xlu0 %v492, 125
        %v513 = vpop.permute.xlu0 %512
        %514 = vrot.lane.b32.xlu0 %v493, 125
        %v515 = vpop.permute.xlu0 %514
        %516 = vrot.lane.b32.xlu0 %v494, 125
        %v517 = vpop.permute.xlu0 %516
        %518 = vrot.lane.b32.xlu0 %v495, 125
        %v519 = vpop.permute.xlu0 %518
        %vm520 = vcmask 1022976
        %v521 = vsel %vm520, %v505, %v507
        %v522 = vsel %vm520, %v509, %v511
        %v523 = vsel %vm520, %v513, %v515
        %v524 = vsel %vm520, %v517, %v519
        %v529 = vmax.f32 %v488, %v521
        %v530 = vmax.f32 %v490, %v522
        %v531 = vmax.f32 %v492, %v523
        %v532 = vmax.f32 %v494, %v524
        %vm537 = vcmask 1046528
        %v538 = vrot.slane %v529, 1
        %v539 = vrot.slane %v530, 1
        %v540 = vsel %vm537, %v538, %v539
        %v541 = vrot.slane %v531, 1
        %v542 = vsel %vm537, %v539, %v541
        %v543 = vrot.slane %v532, 1
        %v544 = vsel %vm537, %v541, %v543
        %v549 = vmax.f32 %v529, %v540
        %v550 = vmax.f32 %v530, %v542
        %v551 = vmax.f32 %v531, %v544
        %v552 = vmax.f32 %v532, %v543
        %vm557 = vcmask 1045504
        %v558 = vrot.slane %v549, 2
        %v559 = vrot.slane %v550, 2
        %v560 = vsel %vm557, %v558, %v559
        %v561 = vrot.slane %v551, 2
        %v562 = vsel %vm557, %v559, %v561
        %v563 = vrot.slane %v552, 2
        %v564 = vsel %vm557, %v561, %v563
        %v568 = vmax.f32 %v549, %v560
        %v569 = vmax.f32 %v550, %v562
        %v570 = vmax.f32 %v551, %v564
        %vm573 = vcmask 1044480
        %v574 = vrot.slane %v569, 3
        %v575 = vrot.slane %v570, 3
        %v576 = vsel %vm573, %v574, %v575
        %v580 = vmax.f32 %v568, %v574
        %v581 = vmax.f32 %v569, %v576
        %v582 = vmax.f32 %v570, %v575
        %v583 = vrot.slane %v400, 3
        %v584 = vrot.slane %v401, 3
        %v585 = vrot.slane %v402, 3
        %v586 = vsel %vm573, %v583, %v585
        %v587 = vrot.slane %v403, 3
        %v588 = vsel %vm573, %v584, %v587
        %589 = vrot.lane.b32.xlu0 %v583, 125
        %v590 = vpop.permute.xlu0 %589
        %591 = vrot.lane.b32.xlu0 %v584, 125
        %v592 = vpop.permute.xlu0 %591
        %593 = vrot.lane.b32.xlu0 %v586, 125
        %v594 = vpop.permute.xlu0 %593
        %595 = vrot.lane.b32.xlu0 %v588, 125
        %v596 = vpop.permute.xlu0 %595
        %597 = vrot.lane.b32.xlu0 %v585, 125
        %v598 = vpop.permute.xlu0 %597
        %599 = vrot.lane.b32.xlu0 %v587, 125
        %v600 = vpop.permute.xlu0 %599
        %v601 = vsel %vm520, %v590, %v592
        %v602 = vsel %vm520, %v594, %v596
        %v603 = vsel %vm520, %v598, %v600
        %vm607 = vcmp.eq.f32.partialorder %v580, %v601
        %vm608 = vcmp.eq.f32.partialorder %v581, %v602
        %vm609 = vcmp.eq.f32.partialorder %v582, %v603
        %v610 = vsel %vm607, %v601, 0.0
        %v611 = vsel %vm608, %v602, 0.0
        %v612 = vsel %vm609, %v603, 0.0
        %613 = vst [vmem:[%s314 - $0x5] sm:$0xe0] %v610
        %614 = vst [vmem:[%s314 + $0x3] sm:$0xff] %v611
        %615 = vst [vmem:[%s314 + $0xb] sm:$0x1f] %v612
        %s616 = sand.u32 %s147, 1
        %s617 = scalar_lea.sflag [#allocation6], %s616
        %s618 = sand.u32 %s147, 1
        %s619 = smul.addr %s618, 16
        %s620 = scalar_lea.vmem [#allocation10], %s619
        // Predicated region
        $region45: #{tpu_custom_call.1} parent=31 // pred_check
          %p621 = pneg %p157
        $region46: #{tpu_custom_call.1} parent=31 // pred_check_branch
          %623 = sbr.rel (%p621) target = $region48
        $region47: #{tpu_custom_call.1} parent=31 // pred_region
          %s624 = smul.u32 2, %s30
          %s626 = ssub.s32 256, 256
          %627 = vsyncadd %s617, %s626
          %s628 = smul.addr %s29, 2
          %s629 = sadd.s32 %s624, %s628
          %s630 = smul.addr %s629, 128
          %s631 = scalar_lea.hbm %s4, %s630
          %s632 = sshll.u32 %s620, 4
          %s633 = int_to_ptr.vmem [resolvable:$true] %s632
          %638 = dma.vmem_to_hbm [thread:$0]  %s633, 256, %s631, %s617, 128, 128, 8
        $region48: #{tpu_custom_call.1} parent=31 // pred_fallthru
          _
      $region32: #{tpu_custom_call.1} parent=5 // pred_fallthru
        _
      %p639 = scmp.le.s32.totalorder 2, %s20
      // Predicated region
      $region49: #{tpu_custom_call.1} parent=5 // pred_check
        %p640 = pneg %p639
      $region50: #{tpu_custom_call.1} parent=5 // pred_check_branch
        %642 = sbr.rel (%p640) target = $region52
      $region51: #{tpu_custom_call.1} parent=5 // pred_region
        %s643 = ssub.s32 %s20, 2
        // Predicated region
        $region53: #{tpu_custom_call.1} parent=51 // pred_check
          %p644 = pneg %p163
        $region54: #{tpu_custom_call.1} parent=51 // pred_check_branch
          %646 = sbr.rel (%p644) target = $region56
        $region55: #{tpu_custom_call.1} parent=51 // pred_region
          %s647 = sand.u32 %s148, 1
          %s648 = scalar_lea.sflag [#allocation6], %s647
          %s649 = sand.u32 %s148, 1
          %s650 = smul.addr %s649, 16
          %s651 = scalar_lea.vmem [#allocation10], %s650
          %652 = dma.done %s648, 256
        $region56: #{tpu_custom_call.1} parent=51 // pred_fallthru
          _
      $region52: #{tpu_custom_call.1} parent=5 // pred_fallthru
        _
    $region6: #{tpu_custom_call.1} parent=1 // loop_footer
      %s24 = sadd.s32 1, %s20
    $region7: #{tpu_custom_call.1} parent=1 // loop_footer_branch
      %19 = sbr.rel target = $region3
    $region8: #{tpu_custom_call.1} parent=1 // loop_exit
      _
    %653 = vsyncpa [#allocation5], 1
    %s654 = scalar_lea.sflag [#allocation5], 1
    %655 = vsyncpa %s654, 1
    %656 = vsyncpa [#allocation8], 1
    %s657 = scalar_lea.sflag [#allocation8], 1
    %658 = vsyncpa %s657, 1
    %659 = vsyncpa [#allocation6], 1
    %s660 = scalar_lea.sflag [#allocation6], 1
    %661 = vsyncpa %s660, 1

</llo_original>
